<compile_context>
chip_gen: v7x
topology: tpu7x:2x2x1
jax: 0.10.0
libtpu: 0.0.40
codegen_flags: <defaults>
</compile_context>

<pallas_src>
import functools

import jax
import jax.numpy as jnp
from jax import lax
from jax.experimental import pallas as pl
from jax.experimental.pallas import tpu as pltpu


def _export_conv_kernel(x_ref, w_ref, b_ref, o_ref, xpad_ref,
                        *, H, W, Cin, Cout, K):
    """Fused preprocessing (scale folded into weights) + KxK 'same' conv + bias + ReLU.

    x_ref    : (1, H, W*Cin)          one NHWC image, width*channels on the lane axis
    w_ref    : (K, W*Cin, W*Cout)     per-kernel-row banded weights (1/255 folded in)
    b_ref    : (1, W*Cout)            bias tiled per output lane column
    o_ref    : (1, H, W*Cout)         lane-dense output slab
    xpad_ref : (H+K-1, W*Cin) scratch row-padded copy built in VMEM (no HBM pad copy)
    """
    pad = K // 2

    # Only the K-1 halo rows need explicit zeros (width/channel padding is folded
    # into the banded weight matrix). Build the row-padded image in VMEM scratch.
    xpad_ref[...] = jnp.zeros_like(xpad_ref)
    xpad_ref[pad:pad + H, :] = x_ref[0]

    # K MXU matmuls, accumulated in a lane-dense (H, W*Cout) f32 accumulator.
    acc = jnp.dot(xpad_ref[0:H, :], w_ref[0], preferred_element_type=jnp.float32)
    for kh in range(1, K):
        acc = acc + jnp.dot(xpad_ref[kh:kh + H, :], w_ref[kh],
                            preferred_element_type=jnp.float32)

    acc = acc + b_ref[...]              # broadcast (1, W*Cout) over rows
    o_ref[0] = jnp.maximum(acc, 0.0)    # ReLU; full-width 128-lane store


def export_model_forward(x, weight, bias, *, nhwc=True):
    """JAX/Pallas equivalent of ExportModel.forward with a Conv2d+ReLU backbone.

    x      : if nhwc=True : (B, H, W, Cin) float32, raw [0, 255] values
             if nhwc=False: (B, Cin, H, W) float32, already normalized
    weight : (Cout, Cin, K, K) float32  (PyTorch conv weight layout)
    bias   : (Cout,) float32
    returns: (B, Cout, H, W) float32  (NCHW, matching the PyTorch module output)
    """
    if nhwc:
        x_nhwc = x
        scale = 1.0 / 255.0          # folded into the weights below
    else:
        x_nhwc = jnp.transpose(x, (0, 2, 3, 1))   # already normalized; no scaling
        scale = 1.0

    B, H, W, Cin = x_nhwc.shape
    Cout, _, K, _ = weight.shape
    pad = K // 2
    WC, WCO = W * Cin, W * Cout

    # ---- tiny one-time glue (weights/bias) --------------------------------
    # Banded weight: wband[kh, wu*Cin+ci, wo*Cout+co] = weight[co,ci,kh,wu-wo+pad]*scale
    # (zero outside the band), so width zero-padding never has to be materialized.
    w_taps = jnp.transpose(weight, (2, 3, 1, 0)).astype(jnp.float32)   # (K,K,Cin,Cout)
    wu = jnp.arange(W)[:, None]          # input column
    wo = jnp.arange(W)[None, :]          # output column
    kw = wu - wo + pad
    valid = (kw >= 0) & (kw < K)
    band = w_taps[:, jnp.clip(kw, 0, K - 1)]                  # (K, W, W, Cin, Cout)
    band = jnp.where(valid[None, :, :, None, None], band, 0.0)
    wband = (jnp.transpose(band, (0, 1, 3, 2, 4))             # (K, Win, Cin, Wout, Cout)
             .reshape(K, WC, WCO) * jnp.float32(scale))
    b_row = jnp.tile(bias.astype(jnp.float32), W).reshape(1, WCO)

    # Metadata-only reshape: channels stay fastest, lanes carry W*Cin.
    x2d = x_nhwc.astype(jnp.float32).reshape(B, H, WC)

    kernel = functools.partial(_export_conv_kernel,
                               H=H, W=W, Cin=Cin, Cout=Cout, K=K)

    out_slab = pl.pallas_call(
        kernel,
        out_shape=jax.ShapeDtypeStruct((B, H, WCO), jnp.float32),
        grid_spec=pltpu.PrefetchScalarGridSpec(
            num_scalar_prefetch=0,
            grid=(B,),                               # one image per grid step
            in_specs=[
                pl.BlockSpec((1, H, WC), lambda b: (b, 0, 0)),
                pl.BlockSpec((K, WC, WCO), lambda b: (0, 0, 0)),
                pl.BlockSpec((1, WCO), lambda b: (0, 0)),
            ],
            out_specs=pl.BlockSpec((1, H, WCO), lambda b: (b, 0, 0)),
            scratch_shapes=[pltpu.VMEM((H + K - 1, WC), jnp.float32)],
        ),
        compiler_params=pltpu.CompilerParams(
            dimension_semantics=("parallel",),       # megacore split on v7x
            vmem_limit_bytes=32 * 1024 * 1024,
        ),
    )(x2d, wband, b_row)

    # TODO(synk): for images too large for one VMEM block, add a row-tiled grid
    # with manual halo DMA (pl.ANY + make_async_copy) instead of per-image blocks.

    out_nhwc = out_slab.reshape(B, H, W, Cout)       # metadata-only reshape
    # Match the PyTorch module's NCHW conv output convention.
    return jnp.transpose(out_nhwc, (0, 3, 1, 2))


def _reference_forward(x_nhwc, weight, bias):
    """Pure-JAX reference mirroring the PyTorch module (NCHW conv)."""
    x_nchw = jnp.transpose(x_nhwc, (0, 3, 1, 2)) / 255.0
    y = lax.conv_general_dilated(
        x_nchw, weight, window_strides=(1, 1), padding="SAME",
        dimension_numbers=("NCHW", "OIHW", "NCHW"))
    y = y + bias.reshape(1, -1, 1, 1)
    return jnp.maximum(y, 0.0)


if __name__ == "__main__":
    # Small shapes consistent with the module: NHWC image batch, uint8-range values.
    B, H, W, Cin, Cout, K = 2, 16, 16, 3, 8, 3

    key = jax.random.PRNGKey(0)
    kx, kw_, kb = jax.random.split(key, 3)

    # Input the PyTorch ExportModel(nhwc=True) would receive: NHWC, [0, 255].
    x = jax.random.uniform(kx, (B, H, W, Cin), jnp.float32, 0.0, 255.0)

    # Deterministic synthetic Conv2d(3, 8, k=3, pad=1) parameters.
    weight = jax.random.normal(kw_, (Cout, Cin, K, K), jnp.float32) * 0.1
    bias = jax.random.normal(kb, (Cout,), jnp.float32) * 0.01

    out = export_model_forward(x, weight, bias, nhwc=True)
    out = jax.block_until_ready(out)

    ref = jax.block_until_ready(_reference_forward(x, weight, bias))
    assert out.shape == (B, Cout, H, W)
    assert jnp.allclose(out, ref, atol=1e-4, rtol=1e-4), "mismatch vs reference"

    print("KERNEL_OK")
</pallas_src>

<mosaic_0001>
module attributes {stable_mosaic.version = 11 : i64} {
  func.func @_export_conv_kernel(%arg0: i32, %arg1: memref<1x16x48xf32, #tpu.memory_space<vmem>>, %arg2: memref<3x48x128xf32, #tpu.memory_space<vmem>>, %arg3: memref<1x128xf32, #tpu.memory_space<vmem>>, %arg4: memref<1x16x128xf32, #tpu.memory_space<vmem>>, %arg5: memref<18x48xf32, #tpu.memory_space<vmem>>) attributes {dimension_semantics = [#tpu.dimension_semantics<parallel>], iteration_bounds = array<i64: 2>, scalar_prefetch = 0 : i64, scratch_operands = 1 : i64, tpu.core_type = #tpu.core_type<tc>, window_params = [{transform_indices = @transform_0, window_bounds = array<i64: 1, 16, 48>}, {pipeline_mode = #tpu.pipeline_mode<synchronous>, transform_indices = @transform_1, window_bounds = array<i64: 3, 48, 128>}, {pipeline_mode = #tpu.pipeline_mode<synchronous>, transform_indices = @transform_2, window_bounds = array<i64: 1, 128>}, {transform_indices = @transform_3, window_bounds = array<i64: 1, 16, 128>}]} {
    %cst = arith.constant 0.000000e+00 : f32
    %0 = vector.broadcast %cst : f32 to vector<18x48xf32>
    %c0 = arith.constant 0 : index
    %c0_0 = arith.constant 0 : index
    %1 = vector.load %arg5[%c0, %c0_0] : memref<18x48xf32, #tpu.memory_space<vmem>>, vector<18x48xf32>
    tpu.vector_store %arg5[%c0, %c0_0], %0 {strides = array<i32>} : memref<18x48xf32, #tpu.memory_space<vmem>>, vector<18x48xf32>,
    %c0_1 = arith.constant 0 : index
    %c0_2 = arith.constant 0 : index
    %c0_3 = arith.constant 0 : index
    %2 = vector.load %arg1[%c0_1, %c0_2, %c0_3] : memref<1x16x48xf32, #tpu.memory_space<vmem>>, vector<1x16x48xf32>
    %3 = vector.shape_cast %2 : vector<1x16x48xf32> to vector<16x48xf32>
    %c1 = arith.constant 1 : index
    %c0_4 = arith.constant 0 : index
    %4 = vector.load %arg5[%c1, %c0_4] : memref<18x48xf32, #tpu.memory_space<vmem>>, vector<16x48xf32>
    tpu.vector_store %arg5[%c1, %c0_4], %3 {strides = array<i32>} : memref<18x48xf32, #tpu.memory_space<vmem>>, vector<16x48xf32>,
    %c0_5 = arith.constant 0 : index
    %c0_6 = arith.constant 0 : index
    %5 = vector.load %arg5[%c0_5, %c0_6] : memref<18x48xf32, #tpu.memory_space<vmem>>, vector<16x48xf32>
    %c0_7 = arith.constant 0 : index
    %c0_8 = arith.constant 0 : index
    %c0_9 = arith.constant 0 : index
    %6 = vector.load %arg2[%c0_7, %c0_8, %c0_9] : memref<3x48x128xf32, #tpu.memory_space<vmem>>, vector<1x48x128xf32>
    %7 = vector.shape_cast %6 : vector<1x48x128xf32> to vector<48x128xf32>
    %cst_10 = arith.constant dense<0.000000e+00> : vector<16x128xf32>
    %8 = tpu.matmul %5, %7, %cst_10 {dimension_numbers = #tpu.dot_dimension_numbers<[1], [0], [0], [1], [0, 0, 1, 1], [], []>} : vector<16x48xf32>, vector<48x128xf32>, vector<16x128xf32> -> vector<16x128xf32>
    %c1_11 = arith.constant 1 : index
    %c0_12 = arith.constant 0 : index
    %9 = vector.load %arg5[%c1_11, %c0_12] : memref<18x48xf32, #tpu.memory_space<vmem>>, vector<16x48xf32>
    %c1_13 = arith.constant 1 : index
    %c0_14 = arith.constant 0 : index
    %c0_15 = arith.constant 0 : index
    %10 = vector.load %arg2[%c1_13, %c0_14, %c0_15] : memref<3x48x128xf32, #tpu.memory_space<vmem>>, vector<1x48x128xf32>
    %11 = vector.shape_cast %10 : vector<1x48x128xf32> to vector<48x128xf32>
    %cst_16 = arith.constant dense<0.000000e+00> : vector<16x128xf32>
    %12 = tpu.matmul %9, %11, %cst_16 {dimension_numbers = #tpu.dot_dimension_numbers<[1], [0], [0], [1], [0, 0, 1, 1], [], []>} : vector<16x48xf32>, vector<48x128xf32>, vector<16x128xf32> -> vector<16x128xf32>
    %13 = arith.addf %8, %12 : vector<16x128xf32>
    %c2 = arith.constant 2 : index
    %c0_17 = arith.constant 0 : index
    %14 = vector.load %arg5[%c2, %c0_17] : memref<18x48xf32, #tpu.memory_space<vmem>>, vector<16x48xf32>
    %c2_18 = arith.constant 2 : index
    %c0_19 = arith.constant 0 : index
    %c0_20 = arith.constant 0 : index
    %15 = vector.load %arg2[%c2_18, %c0_19, %c0_20] : memref<3x48x128xf32, #tpu.memory_space<vmem>>, vector<1x48x128xf32>
    %16 = vector.shape_cast %15 : vector<1x48x128xf32> to vector<48x128xf32>
    %cst_21 = arith.constant dense<0.000000e+00> : vector<16x128xf32>
    %17 = tpu.matmul %14, %16, %cst_21 {dimension_numbers = #tpu.dot_dimension_numbers<[1], [0], [0], [1], [0, 0, 1, 1], [], []>} : vector<16x48xf32>, vector<48x128xf32>, vector<16x128xf32> -> vector<16x128xf32>
    %18 = arith.addf %13, %17 : vector<16x128xf32>
    %c0_22 = arith.constant 0 : index
    %c0_23 = arith.constant 0 : index
    %19 = vector.load %arg3[%c0_22, %c0_23] : memref<1x128xf32, #tpu.memory_space<vmem>>, vector<1x128xf32>
    %20 = vector.broadcast %19 : vector<1x128xf32> to vector<16x128xf32>
    %21 = arith.addf %18, %20 : vector<16x128xf32>
    %cst_24 = arith.constant 0.000000e+00 : f32
    %22 = vector.broadcast %cst_24 : f32 to vector<16x128xf32>
    %23 = arith.maximumf %21, %22 : vector<16x128xf32>
    %c0_25 = arith.constant 0 : index
    %c0_26 = arith.constant 0 : index
    %c0_27 = arith.constant 0 : index
    %24 = vector.load %arg4[%c0_25, %c0_26, %c0_27] : memref<1x16x128xf32, #tpu.memory_space<vmem>>, vector<1x16x128xf32>
    %25 = vector.shape_cast %24 : vector<1x16x128xf32> to vector<16x128xf32>
    %26 = vector.shape_cast %23 : vector<16x128xf32> to vector<1x16x128xf32>
    tpu.vector_store %arg4[%c0_25, %c0_26, %c0_27], %26 {strides = array<i32>} : memref<1x16x128xf32, #tpu.memory_space<vmem>>, vector<1x16x128xf32>,
    return
  }
  func.func @transform_0(%arg0: i32) -> (i32, i32, i32) {
    %c0_i32 = arith.constant 0 : i32
    %c0_i32_0 = arith.constant 0 : i32
    %c0_i32_1 = arith.constant 0 : i32
    return %arg0, %c0_i32, %c0_i32_0 : i32, i32, i32
  }
  func.func @transform_1(%arg0: i32) -> (i32, i32, i32) {
    %c0_i32 = arith.constant 0 : i32
    %c0_i32_0 = arith.constant 0 : i32
    %c0_i32_1 = arith.constant 0 : i32
    %c0_i32_2 = arith.constant 0 : i32
    return %c0_i32, %c0_i32_0, %c0_i32_1 : i32, i32, i32
  }
  func.func @transform_2(%arg0: i32) -> (i32, i32) {
    %c0_i32 = arith.constant 0 : i32
    %c0_i32_0 = arith.constant 0 : i32
    %c0_i32_1 = arith.constant 0 : i32
    return %c0_i32, %c0_i32_0 : i32, i32
  }
  func.func @transform_3(%arg0: i32) -> (i32, i32, i32) {
    %c0_i32 = arith.constant 0 : i32
    %c0_i32_0 = arith.constant 0 : i32
    %c0_i32_1 = arith.constant 0 : i32
    return %arg0, %c0_i32, %c0_i32_0 : i32, i32, i32
  }
}

</mosaic_0001>

<llo_original>
// kernel: tpu_custom_call.1
$region0: #{tpu_custom_call.1}
  #allocation0 [shape = 'u32[]', space=smem, size = 0x4, offset = 0x4, fixed_abs, tag = 'smem constant byte address 0x4 - core index']
  #allocation1 [shape = 'u32[144,128]{1,0:T(1,128)}', space=vmem, size = 0x12000, scoped, tag = 'internal scratch']
  #allocation2 [shape = 'f32[18,48]{1,0:T(8,128)}', space=vmem, size = 0x3000, scoped, tag = 'scratch operand']
  %s0 = inlined_call_operand.hbm [shape: f32[2,16,48], index: 0, kind: input, shape index: {}]
  %s1 = inlined_call_operand.hbm [shape: f32[3,48,128], index: 1, kind: input, shape index: {}]
  %s2 = inlined_call_operand.vmem [shape: f32[1,128], index: 2, kind: input, shape index: {}]
  %s3 = inlined_call_operand.hbm [shape: f32[2,16,128], index: 3, kind: output, shape index: {}]
  %s4 = sld [smem:[#allocation0]]
  $region53: #{tpu_custom_call.1} parent=0
    _
  %s6 = ssub.s32 1, %s4
  %s7 = scalar_select 0, %s6, %s4
  $region1: #{tpu_custom_call.1} parent=0
    #allocation3 [shape = 'u8[16384]{0}', space=vmem, size = 0x4000, scoped, tag = 'input window, operand 0']
    #allocation4 [shape = 's32[2]{0}', space=sflag, size = 0x8, scoped, tag = 'scoped memory for tpu_custom_call.1']
    #allocation5 [shape = 's32[2]{0}', space=sflag, size = 0x8, scoped, tag = 'scoped memory for tpu_custom_call.1']
    #allocation6 [shape = 'u8[73728]{0}', space=vmem, size = 0x12000, scoped, tag = 'input window, operand 1, single buffered']
    #allocation7 [shape = 's32[1]{0}', space=sflag, size = 0x4, scoped, tag = 'scoped memory for tpu_custom_call.1']
    #allocation8 [shape = 'u8[16384]{0}', space=vmem, size = 0x4000, scoped, tag = 'output window, operand 0']
    %8 = vsyncpa [#allocation4], 0
    %s9 = scalar_lea.sflag [#allocation4], 1
    %10 = vsyncpa %s9, 0
    %11 = vsyncpa [#allocation7], 0
    %12 = vsyncpa [#allocation5], 0
    %s13 = scalar_lea.sflag [#allocation5], 1
    %14 = vsyncpa %s13, 0
    loop: start=0, step=1, limit=4
    $region2: #{tpu_custom_call.1} parent=1 // loop_pre_header
      _
    $region3: #{tpu_custom_call.1} parent=1 // loop_header
      %s16 = sphi 0, %s20
      %p17 = scmp.ge.s32.totalorder %s16, 4
      %s26 = sphi 0, %s28
      %s29 = sphi 0, %s26
      %s30 = sphi 0, %s29
      %s46 = sphi 0, %s30
      %s50 = sphi 0, %s50
      %s52 = sphi 0, %s50
      %s53 = sphi 0, %s52
      %s67 = sphi 0, %s53
      %s71 = sphi 0, %s71
      %s73 = sphi 0, %s71
      %s74 = sphi 0, %s73
      %s88 = sphi 0, %s74
      %s94 = sphi 0, %s96
      %s97 = sphi 0, %s94
      %s98 = sphi 0, %s97
      %s114 = sphi 0, %s98
    $region4: #{tpu_custom_call.1} parent=1 // loop_header_branch
      %19 = sbr.rel (%p17) target = $region8
    $region5: #{tpu_custom_call.1} parent=1 // loop_body
      %s21 = ssub.s32 %s16, 1
      %s22 = ssub.s32 %s16, 2
      %s23 = sadd.s32 %s16, 1
      %s24 = ssub.s32 %s16, %s23
      %p25 = scmp.eq.s32.totalorder %s24, 0
      %s27 = sadd.s32 %s26, 1
      %s28 = scalar_select %p25, %s26, %s27
      %p31 = pneg %p25
      %p32 = scmp.eq.s32.totalorder %s16, 1
      %p33 = por %p31, %p32
      %p34 = scmp.ne.s32.totalorder %s26, %s29
      %p35 = scmp.eq.s32.totalorder %s16, 0
      %p36 = por %p34, %p35
      %p37 = scmp.ne.s32.totalorder %s26, %s29
      %p38 = scmp.eq.s32.totalorder %s21, 1
      %p39 = por %p37, %p38
      %p40 = scmp.ne.s32.totalorder %s29, %s30
      %p41 = scmp.eq.s32.totalorder %s21, 0
      %p42 = por %p40, %p41
      %p43 = scmp.ne.s32.totalorder %s29, %s30
      %p44 = scmp.eq.s32.totalorder %s22, 1
      %p45 = por %p43, %p44
      %p47 = scmp.ne.s32.totalorder %s30, %s46
      %p48 = scmp.eq.s32.totalorder %s22, 0
      %p49 = por %p47, %p48
      %s51 = sadd.s32 %s50, 1
      %p54 = scmp.eq.s32.totalorder %s16, 1
      %p55 = scmp.ne.s32.totalorder %s50, %s52
      %p56 = scmp.eq.s32.totalorder %s16, 0
      %p57 = por %p55, %p56
      %p58 = scmp.ne.s32.totalorder %s50, %s52
      %p59 = scmp.eq.s32.totalorder %s21, 1
      %p60 = por %p58, %p59
      %p61 = scmp.ne.s32.totalorder %s52, %s53
      %p62 = scmp.eq.s32.totalorder %s21, 0
      %p63 = por %p61, %p62
      %p64 = scmp.ne.s32.totalorder %s52, %s53
      %p65 = scmp.eq.s32.totalorder %s22, 1
      %p66 = por %p64, %p65
      %p68 = scmp.ne.s32.totalorder %s53, %s67
      %p69 = scmp.eq.s32.totalorder %s22, 0
      %p70 = por %p68, %p69
      %s72 = sadd.s32 %s71, 1
      %p75 = scmp.eq.s32.totalorder %s16, 1
      %p76 = scmp.ne.s32.totalorder %s71, %s73
      %p77 = scmp.eq.s32.totalorder %s16, 0
      %p78 = por %p76, %p77
      %p79 = scmp.ne.s32.totalorder %s71, %s73
      %p80 = scmp.eq.s32.totalorder %s21, 1
      %p81 = por %p79, %p80
      %p82 = scmp.ne.s32.totalorder %s73, %s74
      %p83 = scmp.eq.s32.totalorder %s21, 0
      %p84 = por %p82, %p83
      %p85 = scmp.ne.s32.totalorder %s73, %s74
      %p86 = scmp.eq.s32.totalorder %s22, 1
      %p87 = por %p85, %p86
      %p89 = scmp.ne.s32.totalorder %s74, %s88
      %p90 = scmp.eq.s32.totalorder %s22, 0
      %p91 = por %p89, %p90
      %s92 = ssub.s32 %s16, %s23
      %p93 = scmp.eq.s32.totalorder %s92, 0
      %s95 = sadd.s32 %s94, 1
      %s96 = scalar_select %p93, %s94, %s95
      %p99 = pneg %p93
      %p100 = scmp.eq.s32.totalorder %s16, 1
      %p101 = por %p99, %p100
      %p102 = scmp.ne.s32.totalorder %s94, %s97
      %p103 = scmp.eq.s32.totalorder %s16, 0
      %p104 = por %p102, %p103
      %p105 = scmp.ne.s32.totalorder %s94, %s97
      %p106 = scmp.eq.s32.totalorder %s21, 1
      %p107 = por %p105, %p106
      %p108 = scmp.ne.s32.totalorder %s97, %s98
      %p109 = scmp.eq.s32.totalorder %s21, 0
      %p110 = por %p108, %p109
      %p111 = scmp.ne.s32.totalorder %s97, %s98
      %p112 = scmp.eq.s32.totalorder %s22, 1
      %p113 = por %p111, %p112
      %p115 = scmp.ne.s32.totalorder %s98, %s114
      %p116 = scmp.eq.s32.totalorder %s22, 0
      %p117 = por %p115, %p116
      %p118 = scmp.le.s32.totalorder 1, %s16
      %p119 = scmp.lt.s32.totalorder %s16, 3
      %p120 = pnand %p118, %p119
      %p121 = pneg %p120
      // Predicated region
      $region9: #{tpu_custom_call.1} parent=5 // pred_check
        _
      $region10: #{tpu_custom_call.1} parent=5 // pred_check_branch
        %123 = sbr.rel (%p120) target = $region12
      $region11: #{tpu_custom_call.1} parent=5 // pred_region
        %s124 = ssub.s32 %s16, 1
        // Predicated region
        $region13: #{tpu_custom_call.1} parent=11 // pred_check
          %p125 = pneg %p63
        $region14: #{tpu_custom_call.1} parent=11 // pred_check_branch
          %127 = sbr.rel (%p125) target = $region16
        $region15: #{tpu_custom_call.1} parent=11 // pred_region
          %s129 = ssub.s32 2304, 2304
          %130 = vsyncadd [#allocation7], %s129
          %s131 = sshll.u32 [#allocation6], 4
          %s132 = int_to_ptr.vmem [resolvable:$true] %s131
          %137 = dma.hbm_to_vmem [thread:$0]  %s1, 2304, %s132, [#allocation7], 128, 128, 8
        $region16: #{tpu_custom_call.1} parent=11 // pred_fallthru
          _
        // Predicated region
        $region17: #{tpu_custom_call.1} parent=11 // pred_check
          %p138 = pneg %p84
        $region18: #{tpu_custom_call.1} parent=11 // pred_check_branch
          %140 = sbr.rel (%p138) target = $region20
        $region19: #{tpu_custom_call.1} parent=11 // pred_region
          _
        $region20: #{tpu_custom_call.1} parent=11 // pred_fallthru
          _
      $region12: #{tpu_custom_call.1} parent=5 // pred_fallthru
        _
      %p141 = scmp.lt.s32.totalorder %s16, 2
      // Predicated region
      $region21: #{tpu_custom_call.1} parent=5 // pred_check
        %p142 = pneg %p141
      $region22: #{tpu_custom_call.1} parent=5 // pred_check_branch
        %144 = sbr.rel (%p142) target = $region24
      $region23: #{tpu_custom_call.1} parent=5 // pred_region
        // Predicated region
        $region25: #{tpu_custom_call.1} parent=23 // pred_check
          %p145 = pneg %p36
        $region26: #{tpu_custom_call.1} parent=23 // pred_check_branch
          %147 = sbr.rel (%p145) target = $region28
        $region27: #{tpu_custom_call.1} parent=23 // pred_region
          %s148 = sand.u32 %s26, 1
          %s149 = scalar_lea.sflag [#allocation4], %s148
          %s150 = sand.u32 %s26, 1
          %s151 = smul.addr %s150, 16
          %s152 = scalar_lea.vmem [#allocation3], %s151
          %s154 = ssub.s32 256, 256
          %155 = vsyncadd %s149, %s154
          %s156 = smul.addr %s16, 2
          %s157 = smul.addr %s156, 128
          %s158 = scalar_lea.hbm %s0, %s157
          %s159 = sshll.u32 %s152, 4
          %s160 = int_to_ptr.vmem [resolvable:$true] %s159
          %165 = dma.hbm_to_vmem [thread:$0]  %s158, 256, %s160, %s149, 128, 128, 8
        $region28: #{tpu_custom_call.1} parent=23 // pred_fallthru
          _
      $region24: #{tpu_custom_call.1} parent=5 // pred_fallthru
        _
      %p166 = scmp.le.s32.totalorder 1, %s16
      %p167 = scmp.lt.s32.totalorder %s16, 3
      %p168 = pnand %p166, %p167
      %p169 = pneg %p168
      // Predicated region
      $region29: #{tpu_custom_call.1} parent=5 // pred_check
        _
      $region30: #{tpu_custom_call.1} parent=5 // pred_check_branch
        %171 = sbr.rel (%p168) target = $region32
      $region31: #{tpu_custom_call.1} parent=5 // pred_region
        %s172 = ssub.s32 %s16, 1
        %s173 = sand.u32 %s29, 1
        %s174 = scalar_lea.sflag [#allocation4], %s173
        %s175 = sand.u32 %s29, 1
        %s176 = smul.addr %s175, 16
        %s177 = scalar_lea.vmem [#allocation3], %s176
        // Predicated region
        $region33: #{tpu_custom_call.1} parent=31 // pred_check
          %p178 = pneg %p42
        $region34: #{tpu_custom_call.1} parent=31 // pred_check_branch
          %180 = sbr.rel (%p178) target = $region36
        $region35: #{tpu_custom_call.1} parent=31 // pred_region
          %181 = dma.done %s174, 256
        $region36: #{tpu_custom_call.1} parent=31 // pred_fallthru
          _
        // Predicated region
        $region37: #{tpu_custom_call.1} parent=31 // pred_check
          %p182 = pneg %p63
        $region38: #{tpu_custom_call.1} parent=31 // pred_check_branch
          %184 = sbr.rel (%p182) target = $region40
        $region39: #{tpu_custom_call.1} parent=31 // pred_region
          %185 = dma.done [#allocation7], 2304
        $region40: #{tpu_custom_call.1} parent=31 // pred_fallthru
          _
        %s186 = sand.u32 %s29, 1
        %s187 = scalar_lea.sflag [#allocation4], %s186
        %s188 = sand.u32 %s29, 1
        %s189 = smul.addr %s188, 16
        %s190 = scalar_lea.vmem [#allocation3], %s189
        %p191 = pneg %p42
        %p192 = pneg %p39
        %p193 = pneg %p63
        %p194 = pneg %p60
        %p195 = pneg %p84
        %p196 = pneg %p81
        %p197 = pneg %p110
        %p198 = pneg %p107
        %s199 = sand.u32 %s97, 1
        %s200 = scalar_lea.sflag [#allocation5], %s199
        %s201 = sand.u32 %s97, 1
        %s202 = smul.addr %s201, 16
        %s203 = scalar_lea.vmem [#allocation8], %s202
        %vm204 = vcmask 392192
        %205 = vst.msk [vmem:[#allocation2] sm:$0xff] %vm204, 0.0
        %206 = vst.msk [vmem:[#allocation2 + $0x8] sm:$0xff] %vm204, 0.0
        %vm207 = vcmask 386048
        %208 = vst.msk [vmem:[#allocation2 + $0x10] sm:$0x3] %vm207, 0.0
        %v209 = vld [vmem:[%s177] sm:$0xff]
        %v210 = vld [vmem:[%s177 + $0x8] sm:$0xff]
        %211 = vst.msk [vmem:[#allocation2 + $0x1] sm:$0xff] %vm204, %v209
        %212 = vst.msk [vmem:[#allocation2 + $0x9] sm:$0xff] %vm204, %v210
        %v213 = vld [vmem:[#allocation2] sm:$0xff]
        %v214 = vld [vmem:[#allocation2 + $0x8] sm:$0xff]
        %v215 = vld [vmem:[#allocation6] sm:$0xff]
        %v216 = vld [vmem:[#allocation6 + $0x8] sm:$0xff]
        %v217 = vld [vmem:[#allocation6 + $0x10] sm:$0xff]
        %v218 = vld [vmem:[#allocation6 + $0x18] sm:$0xff]
        %v219 = vld [vmem:[#allocation6 + $0x20] sm:$0xff]
        %v220 = vld [vmem:[#allocation6 + $0x28] sm:$0xff]
        %v221 = vld [vmem:[#allocation2 + $0x1] sm:$0xff]
        %v222 = vld [vmem:[#allocation2 + $0x9] sm:$0xff]
        %s223 = scalar_lea.vmem [#allocation6], 48
        %v224 = vld [vmem:[%s223] sm:$0xff]
        %v225 = vld [vmem:[%s223 + $0x8] sm:$0xff]
        %v226 = vld [vmem:[%s223 + $0x10] sm:$0xff]
        %v227 = vld [vmem:[%s223 + $0x18] sm:$0xff]
        %v228 = vld [vmem:[%s223 + $0x20] sm:$0xff]
        %v229 = vld [vmem:[%s223 + $0x28] sm:$0xff]
        %v231 = vsel %vm204, %v221, 0
        %v234 = vsel %vm204, %v222, 0
        %236 = vmatprep.subr.mxu0 0.0
        %237 = vmatpush1.msra.mxu0 %v224
        %238 = vmatprep.subr.mxu0 0.0
        %239 = vmatpush1.msra.mxu0 %v225
        %240 = vmatprep.subr.mxu0 0.0
        %241 = vmatpush1.msra.mxu0 %v226
        %242 = vmatprep.subr.mxu0 0.0
        %243 = vmatpush1.msra.mxu0 %v227
        %244 = vmatprep.subr.mxu0 0.0
        %245 = vmatpush1.msra.mxu0 %v228
        %246 = vmatprep.subr.mxu0 0.0
        %247 = vmatpush1.msra.mxu0 %v229
        %248 = vmatprep.subr.mxu0 0.0
        %249 = vmatpush1.msra.mxu0 0.0
        %250 = vmatprep.subr.mxu0 0.0
        %251 = vmatpush1.msra.mxu0 0.0
        %252 = vmatprep.subr.mxu0 0.0
        %253 = vmatpush1.msra.mxu0 0.0
        %254 = vmatprep.subr.mxu0 0.0
        %255 = vmatpush1.msra.mxu0 0.0
        %256 = vmatprep.subr.mxu0 0.0
        %257 = vmatpush1.msra.mxu0 0.0
        %258 = vmatprep.subr.mxu0 0.0
        %259 = vmatpush1.msra.mxu0 0.0
        %260 = vmatprep.subr.mxu0 0.0
        %261 = vmatpush1.msra.mxu0 0.0
        %262 = vmatprep.subr.mxu0 0.0
        %263 = vmatpush1.msra.mxu0 0.0
        %264 = vmatprep.subr.mxu0 0.0
        %265 = vmatpush1.msra.mxu0 0.0
        %266 = vmatprep.subr.mxu0 0.0
        %267 = vmatpush1.msra.mxu0 0.0
        %268 = vmatprep.subr.mxu0 0.0
        %269 = vmatpush1.msra.mxu0 0.0
        %270 = vmatprep.subr.mxu0 0.0
        %271 = vmatpush1.msra.mxu0 0.0
        %272 = vmatprep.subr.mxu0 0.0
        %273 = vmatpush1.msra.mxu0 0.0
        %274 = vmatprep.subr.mxu0 0.0
        %275 = vmatpush1.msra.mxu0 0.0
        %276 = vmatprep.subr.mxu0 0.0
        %277 = vmatpush1.msra.mxu0 0.0
        %278 = vmatprep.subr.mxu0 0.0
        %279 = vmatpush1.msra.mxu0 0.0
        %280 = vmatprep.subr.mxu0 0.0
        %281 = vmatpush1.msra.mxu0 0.0
        %282 = vmatprep.subr.mxu0 0.0
        %283 = vmatpush1.msra.mxu0 0.0
        %284 = vmatprep.subr.mxu0 0.0
        %285 = vmatpush1.msra.mxu0 0.0
        %286 = vmatprep.subr.mxu0 0.0
        %287 = vmatpush1.msra.mxu0 0.0
        %288 = vmatprep.subr.mxu0 0.0
        %289 = vmatpush1.msra.mxu0 0.0
        %290 = vmatprep.subr.mxu0 0.0
        %291 = vmatpush1.msra.mxu0 0.0
        %292 = vmatprep.subr.mxu0 0.0
        %293 = vmatpush1.msra.mxu0 0.0
        %294 = vmatprep.subr.mxu0 0.0
        %295 = vmatpush1.msra.mxu0 0.0
        %296 = vmatprep.subr.mxu0 0.0
        %297 = vmatpush1.msra.mxu0 0.0
        %298 = vmatprep.subr.mxu0 0.0
        %299 = vmatpush1.msra.mxu0 0.0
        %300 = vmatprep.mubr.f32.mxu0 0.0
        %301 = vmatmul.mubr.f32.gmra.mrb[0].mxu0 %v231
        %v302 = vpop.f32.mrb[0].mxu0
        %v303 = vadd.f32 0.0, %v302
        %v304 = vpop.f32.mrb[0].mxu0
        %305 = vmatprep.mubr.f32.mxu0 0.0
        %306 = vmatmul.mubr.f32.gmra.mrb[0].mxu0 %v234
        %v307 = vpop.f32.mrb[0].mxu0
        %v308 = vadd.f32 0.0, %v307
        %v309 = vpop.f32.mrb[0].mxu0
        %310 = vdwg.mxu0
        %v312 = vsel %vm204, %v213, 0
        %v315 = vsel %vm204, %v214, 0
        %317 = vmatprep.subr.mxu0 0.0
        %318 = vmatpush1.msra.mxu0 %v215
        %319 = vmatprep.subr.mxu0 0.0
        %320 = vmatpush1.msra.mxu0 %v216
        %321 = vmatprep.subr.mxu0 0.0
        %322 = vmatpush1.msra.mxu0 %v217
        %323 = vmatprep.subr.mxu0 0.0
        %324 = vmatpush1.msra.mxu0 %v218
        %325 = vmatprep.subr.mxu0 0.0
        %326 = vmatpush1.msra.mxu0 %v219
        %327 = vmatprep.subr.mxu0 0.0
        %328 = vmatpush1.msra.mxu0 %v220
        %329 = vmatprep.subr.mxu0 0.0
        %330 = vmatpush1.msra.mxu0 0.0
        %331 = vmatprep.subr.mxu0 0.0
        %332 = vmatpush1.msra.mxu0 0.0
        %333 = vmatprep.subr.mxu0 0.0
        %334 = vmatpush1.msra.mxu0 0.0
        %335 = vmatprep.subr.mxu0 0.0
        %336 = vmatpush1.msra.mxu0 0.0
        %337 = vmatprep.subr.mxu0 0.0
        %338 = vmatpush1.msra.mxu0 0.0
        %339 = vmatprep.subr.mxu0 0.0
        %340 = vmatpush1.msra.mxu0 0.0
        %341 = vmatprep.subr.mxu0 0.0
        %342 = vmatpush1.msra.mxu0 0.0
        %343 = vmatprep.subr.mxu0 0.0
        %344 = vmatpush1.msra.mxu0 0.0
        %345 = vmatprep.subr.mxu0 0.0
        %346 = vmatpush1.msra.mxu0 0.0
        %347 = vmatprep.subr.mxu0 0.0
        %348 = vmatpush1.msra.mxu0 0.0
        %349 = vmatprep.subr.mxu0 0.0
        %350 = vmatpush1.msra.mxu0 0.0
        %351 = vmatprep.subr.mxu0 0.0
        %352 = vmatpush1.msra.mxu0 0.0
        %353 = vmatprep.subr.mxu0 0.0
        %354 = vmatpush1.msra.mxu0 0.0
        %355 = vmatprep.subr.mxu0 0.0
        %356 = vmatpush1.msra.mxu0 0.0
        %357 = vmatprep.subr.mxu0 0.0
        %358 = vmatpush1.msra.mxu0 0.0
        %359 = vmatprep.subr.mxu0 0.0
        %360 = vmatpush1.msra.mxu0 0.0
        %361 = vmatprep.subr.mxu0 0.0
        %362 = vmatpush1.msra.mxu0 0.0
        %363 = vmatprep.subr.mxu0 0.0
        %364 = vmatpush1.msra.mxu0 0.0
        %365 = vmatprep.subr.mxu0 0.0
        %366 = vmatpush1.msra.mxu0 0.0
        %367 = vmatprep.subr.mxu0 0.0
        %368 = vmatpush1.msra.mxu0 0.0
        %369 = vmatprep.subr.mxu0 0.0
        %370 = vmatpush1.msra.mxu0 0.0
        %371 = vmatprep.subr.mxu0 0.0
        %372 = vmatpush1.msra.mxu0 0.0
        %373 = vmatprep.subr.mxu0 0.0
        %374 = vmatpush1.msra.mxu0 0.0
        %375 = vmatprep.subr.mxu0 0.0
        %376 = vmatpush1.msra.mxu0 0.0
        %377 = vmatprep.subr.mxu0 0.0
        %378 = vmatpush1.msra.mxu0 0.0
        %379 = vmatprep.subr.mxu0 0.0
        %380 = vmatpush1.msra.mxu0 0.0
        %381 = vmatprep.mubr.f32.mxu0 0.0
        %382 = vmatmul.mubr.f32.gmra.mrb[0].mxu0 %v312
        %v383 = vpop.f32.mrb[0].mxu0
        %v384 = vadd.f32 %v303, %v383
        %v385 = vpop.f32.mrb[0].mxu0
        %386 = vmatprep.mubr.f32.mxu0 0.0
        %387 = vmatmul.mubr.f32.gmra.mrb[0].mxu0 %v315
        %v388 = vpop.f32.mrb[0].mxu0
        %v389 = vadd.f32 %v308, %v388
        %v390 = vpop.f32.mrb[0].mxu0
        %391 = vdwg.mxu0
        %v392 = vld [vmem:[#allocation2 + $0x2] sm:$0xff]
        %v393 = vld [vmem:[#allocation2 + $0xa] sm:$0xff]
        %s394 = scalar_lea.vmem [#allocation6], 96
        %v395 = vld [vmem:[%s394] sm:$0xff]
        %v396 = vld [vmem:[%s394 + $0x8] sm:$0xff]
        %v397 = vld [vmem:[%s394 + $0x10] sm:$0xff]
        %v398 = vld [vmem:[%s394 + $0x18] sm:$0xff]
        %v399 = vld [vmem:[%s394 + $0x20] sm:$0xff]
        %v400 = vld [vmem:[%s394 + $0x28] sm:$0xff]
        %v402 = vsel %vm204, %v392, 0
        %v405 = vsel %vm204, %v393, 0
        %407 = vmatprep.subr.mxu0 0.0
        %408 = vmatpush1.msra.mxu0 %v395
        %409 = vmatprep.subr.mxu0 0.0
        %410 = vmatpush1.msra.mxu0 %v396
        %411 = vmatprep.subr.mxu0 0.0
        %412 = vmatpush1.msra.mxu0 %v397
        %413 = vmatprep.subr.mxu0 0.0
        %414 = vmatpush1.msra.mxu0 %v398
        %415 = vmatprep.subr.mxu0 0.0
        %416 = vmatpush1.msra.mxu0 %v399
        %417 = vmatprep.subr.mxu0 0.0
        %418 = vmatpush1.msra.mxu0 %v400
        %419 = vmatprep.subr.mxu0 0.0
        %420 = vmatpush1.msra.mxu0 0.0
        %421 = vmatprep.subr.mxu0 0.0
        %422 = vmatpush1.msra.mxu0 0.0
        %423 = vmatprep.subr.mxu0 0.0
        %424 = vmatpush1.msra.mxu0 0.0
        %425 = vmatprep.subr.mxu0 0.0
        %426 = vmatpush1.msra.mxu0 0.0
        %427 = vmatprep.subr.mxu0 0.0
        %428 = vmatpush1.msra.mxu0 0.0
        %429 = vmatprep.subr.mxu0 0.0
        %430 = vmatpush1.msra.mxu0 0.0
        %431 = vmatprep.subr.mxu0 0.0
        %432 = vmatpush1.msra.mxu0 0.0
        %433 = vmatprep.subr.mxu0 0.0
        %434 = vmatpush1.msra.mxu0 0.0
        %435 = vmatprep.subr.mxu0 0.0
        %436 = vmatpush1.msra.mxu0 0.0
        %437 = vmatprep.subr.mxu0 0.0
        %438 = vmatpush1.msra.mxu0 0.0
        %439 = vmatprep.subr.mxu0 0.0
        %440 = vmatpush1.msra.mxu0 0.0
        %441 = vmatprep.subr.mxu0 0.0
        %442 = vmatpush1.msra.mxu0 0.0
        %443 = vmatprep.subr.mxu0 0.0
        %444 = vmatpush1.msra.mxu0 0.0
        %445 = vmatprep.subr.mxu0 0.0
        %446 = vmatpush1.msra.mxu0 0.0
        %447 = vmatprep.subr.mxu0 0.0
        %448 = vmatpush1.msra.mxu0 0.0
        %449 = vmatprep.subr.mxu0 0.0
        %450 = vmatpush1.msra.mxu0 0.0
        %451 = vmatprep.subr.mxu0 0.0
        %452 = vmatpush1.msra.mxu0 0.0
        %453 = vmatprep.subr.mxu0 0.0
        %454 = vmatpush1.msra.mxu0 0.0
        %455 = vmatprep.subr.mxu0 0.0
        %456 = vmatpush1.msra.mxu0 0.0
        %457 = vmatprep.subr.mxu0 0.0
        %458 = vmatpush1.msra.mxu0 0.0
        %459 = vmatprep.subr.mxu0 0.0
        %460 = vmatpush1.msra.mxu0 0.0
        %461 = vmatprep.subr.mxu0 0.0
        %462 = vmatpush1.msra.mxu0 0.0
        %463 = vmatprep.subr.mxu0 0.0
        %464 = vmatpush1.msra.mxu0 0.0
        %465 = vmatprep.subr.mxu0 0.0
        %466 = vmatpush1.msra.mxu0 0.0
        %467 = vmatprep.subr.mxu0 0.0
        %468 = vmatpush1.msra.mxu0 0.0
        %469 = vmatprep.subr.mxu0 0.0
        %470 = vmatpush1.msra.mxu0 0.0
        %471 = vmatprep.mubr.f32.mxu0 0.0
        %472 = vmatmul.mubr.f32.gmra.mrb[0].mxu0 %v402
        %v473 = vpop.f32.mrb[0].mxu0
        %v474 = vadd.f32 0.0, %v473
        %v475 = vpop.f32.mrb[0].mxu0
        %476 = vmatprep.mubr.f32.mxu0 0.0
        %477 = vmatmul.mubr.f32.gmra.mrb[0].mxu0 %v405
        %v478 = vpop.f32.mrb[0].mxu0
        %v479 = vadd.f32 0.0, %v478
        %v480 = vpop.f32.mrb[0].mxu0
        %481 = vdwg.mxu0
        %v482 = vadd.f32 %v384, %v474
        %v483 = vadd.f32 %v389, %v479
        %v484 = vld [vmem:[%s2] sm:$0x1]
        %v486 = vlaneseq
        %v487 = vshrl.u32 %v486, 7
        %v488 = vsub.s32 0, %v487
        %v489 = vrot.slane %v484, %v488
        %v491 = vadd.f32 %v482, %v489
        %v492 = vadd.f32 %v483, %v489
        %v493 = vmax.f32 %v491, 0.0
        %v494 = vmax.f32 %v492, 0.0
        %495 = vst [vmem:[%s203] sm:$0xff] %v493
        %496 = vst [vmem:[%s203 + $0x8] sm:$0xff] %v494
        %s497 = sand.u32 %s97, 1
        %s498 = scalar_lea.sflag [#allocation5], %s497
        %s499 = sand.u32 %s97, 1
        %s500 = smul.addr %s499, 16
        %s501 = scalar_lea.vmem [#allocation8], %s500
        // Predicated region
        $region41: #{tpu_custom_call.1} parent=31 // pred_check
          %p502 = pneg %p107
        $region42: #{tpu_custom_call.1} parent=31 // pred_check_branch
          %504 = sbr.rel (%p502) target = $region44
        $region43: #{tpu_custom_call.1} parent=31 // pred_region
          %s506 = ssub.s32 256, 256
          %507 = vsyncadd %s498, %s506
          %s508 = smul.addr %s21, 2
          %s509 = smul.addr %s508, 128
          %s510 = scalar_lea.hbm %s3, %s509
          %s511 = sshll.u32 %s501, 4
          %s512 = int_to_ptr.vmem [resolvable:$true] %s511
          %517 = dma.vmem_to_hbm [thread:$0]  %s512, 256, %s510, %s498, 128, 128, 8
        $region44: #{tpu_custom_call.1} parent=31 // pred_fallthru
          _
      $region32: #{tpu_custom_call.1} parent=5 // pred_fallthru
        _
      %p518 = scmp.le.s32.totalorder 2, %s16
      // Predicated region
      $region45: #{tpu_custom_call.1} parent=5 // pred_check
        %p519 = pneg %p518
      $region46: #{tpu_custom_call.1} parent=5 // pred_check_branch
        %521 = sbr.rel (%p519) target = $region48
      $region47: #{tpu_custom_call.1} parent=5 // pred_region
        %s522 = ssub.s32 %s16, 2
        // Predicated region
        $region49: #{tpu_custom_call.1} parent=47 // pred_check
          %p523 = pneg %p113
        $region50: #{tpu_custom_call.1} parent=47 // pred_check_branch
          %525 = sbr.rel (%p523) target = $region52
        $region51: #{tpu_custom_call.1} parent=47 // pred_region
          %s526 = sand.u32 %s98, 1
          %s527 = scalar_lea.sflag [#allocation5], %s526
          %s528 = sand.u32 %s98, 1
          %s529 = smul.addr %s528, 16
          %s530 = scalar_lea.vmem [#allocation8], %s529
          %531 = dma.done %s527, 256
        $region52: #{tpu_custom_call.1} parent=47 // pred_fallthru
          _
      $region48: #{tpu_custom_call.1} parent=5 // pred_fallthru
        _
    $region6: #{tpu_custom_call.1} parent=1 // loop_footer
      %s20 = sadd.s32 1, %s16
    $region7: #{tpu_custom_call.1} parent=1 // loop_footer_branch
      %15 = sbr.rel target = $region3
    $region8: #{tpu_custom_call.1} parent=1 // loop_exit
      _
    %532 = vsyncpa [#allocation4], 1
    %s533 = scalar_lea.sflag [#allocation4], 1
    %534 = vsyncpa %s533, 1
    %535 = vsyncpa [#allocation7], 1
    %536 = vsyncpa [#allocation5], 1
    %s537 = scalar_lea.sflag [#allocation5], 1
    %538 = vsyncpa %s537, 1

</llo_original>
